<compile_context>
chip_gen: v7x
topology: tpu7x:2x2x1
jax: 0.10.0
libtpu: 0.0.40
codegen_flags: <defaults>
</compile_context>

<pallas_src>
import jax
import jax.numpy as jnp
from jax.experimental import pallas as pl
from jax.experimental.pallas import tpu as pltpu


# ---------------------------------------------------------------------------
# Tiling / VMEM helpers
# ---------------------------------------------------------------------------
def _round_up(x, m):
    return ((x + m - 1) // m) * m


def _largest_divisor_tile(dim_p, max_tile):
    """Largest multiple of 128 that divides dim_p and is <= max_tile."""
    t = min(max_tile, dim_p)
    t = max((t // 128) * 128, 128)
    while dim_p % t != 0:
        t -= 128
    return t


def _pick_tiles(in_f, out_f):
    in_p = _round_up(in_f, 128)
    out_p = _round_up(out_f, 128)
    tk = _largest_divisor_tile(in_p, 1024)          # big K tiles: few grid steps
    tn = _largest_divisor_tile(out_p, 512)          # lane-dense output tiles
    # Keep >= 2 n-tiles when possible so the "parallel" axis can feed both
    # TensorCores on v7x (irrelevant on single-TC v5e/v6e).
    if out_p // tn < 2 and out_p > 128:
        tn = _largest_divisor_tile(out_p, out_p // 2)
    return tk, tn, in_p, out_p


def _vmem_cap_bytes():
    try:
        return int(pltpu.get_tpu_info().vmem_capacity_bytes)
    except Exception:
        return 64 << 20                              # v7x-safe fallback


def _vmem_budget(Bp, in_p, tk, tn, n_x, n_w, x_bytes, w_bytes):
    resident_x = n_x * 2 * Bp * in_p * x_bytes       # K-resident x (+ x*eps_in)
    weights = n_w * 2 * tk * tn * w_bytes            # double-buffered weight tiles
    rows = 4 * 2 * tn * 4                            # eps_out / bias rows
    outs = 2 * Bp * tn * 4                           # output tiles
    accs = 2 * Bp * tn * 4                           # f32 accumulators
    est = resident_x + weights + rows + outs + accs + (4 << 20)
    cap = max(int(0.75 * _vmem_cap_bytes()), 16 << 20)
    return int(min(max(est, 16 << 20), cap))


# ---------------------------------------------------------------------------
# Kernels
# ---------------------------------------------------------------------------
def _noisy_train_kernel(x_ref, xs_ref, wmu_ref, wsig_ref, eout_ref, b_ref,
                        o_ref, accmu_ref, accsig_ref):
    k = pl.program_id(1)

    @pl.when(k == 0)
    def _():
        accmu_ref[...] = jnp.zeros_like(accmu_ref)
        accsig_ref[...] = jnp.zeros_like(accsig_ref)

    tk = wmu_ref.shape[0]
    off = pl.multiple_of(k * tk, 128)
    # Two MXU matmuls per step; x / x*eps_in are resident in VMEM and sliced
    # here (tile-aligned dynamic slice).
    accmu_ref[...] += jnp.dot(x_ref[:, pl.ds(off, tk)], wmu_ref[...],
                              preferred_element_type=jnp.float32)
    accsig_ref[...] += jnp.dot(xs_ref[:, pl.ds(off, tk)], wsig_ref[...],
                               preferred_element_type=jnp.float32)

    @pl.when(k == pl.num_programs(1) - 1)
    def _():
        # eps_out and the pre-combined bias are applied once, in f32.
        o_ref[...] = (accmu_ref[...] + accsig_ref[...] * eout_ref[...]
                      + b_ref[...]).astype(o_ref.dtype)


def _noisy_eval_kernel(x_ref, wmu_ref, b_ref, o_ref, acc_ref):
    k = pl.program_id(1)

    @pl.when(k == 0)
    def _():
        acc_ref[...] = jnp.zeros_like(acc_ref)

    tk = wmu_ref.shape[0]
    off = pl.multiple_of(k * tk, 128)
    acc_ref[...] += jnp.dot(x_ref[:, pl.ds(off, tk)], wmu_ref[...],
                            preferred_element_type=jnp.float32)

    @pl.when(k == pl.num_programs(1) - 1)
    def _():
        o_ref[...] = (acc_ref[...] + b_ref[...]).astype(o_ref.dtype)


# ---------------------------------------------------------------------------
# Wrapper
# ---------------------------------------------------------------------------
def noisy_linear_forward(x, params, *, training=True):
    """Pallas NoisyLinear forward.

    x:      [..., in_features] float32 (leading dims are flattened to a batch)
    params: dict from init_noisy_linear (weights stored padded as [in_p, out_p],
            optionally bf16; noise kept factorised).
    """
    in_f = params["in_features"]
    out_f = params["out_features"]
    wmu, wsig = params["weight_mu"], params["weight_sigma"]
    w_dtype = wmu.dtype
    use_bf16 = (w_dtype == jnp.bfloat16)
    w_bytes = 2 if use_bf16 else 4

    tk, tn, in_p, out_p = _pick_tiles(in_f, out_f)
    assert wmu.shape == (in_p, out_p), "params were padded with different tiling"

    lead_shape = x.shape[:-1]
    x2 = x.reshape(-1, in_f)
    B = x2.shape[0]
    sub = 16 if use_bf16 else 8                      # bf16 sublane packing
    Bp = max(_round_up(B, sub), sub)

    xp = jnp.pad(x2.astype(jnp.float32), ((0, Bp - B), (0, in_p - in_f)))

    eps_out = params["eps_out"]
    eout_row = jnp.pad(eps_out, (0, out_p - out_f)).reshape(1, out_p)
    if training:
        bias = params["bias_mu"] + params["bias_sigma"] * eps_out   # bias_eps == eps_out
    else:
        bias = params["bias_mu"]
    bias_row = jnp.pad(bias, (0, out_p - out_f)).reshape(1, out_p).astype(jnp.float32)

    grid = (out_p // tn, in_p // tk)

    x_res_spec = pl.BlockSpec((Bp, in_p), lambda n, k: (0, 0))   # K-resident x
    w_spec = pl.BlockSpec((tk, tn), lambda n, k: (k, n))
    row_spec = pl.BlockSpec((1, tn), lambda n, k: (0, n))
    o_spec = pl.BlockSpec((Bp, tn), lambda n, k: (0, n))

    n_w = 2 if training else 1
    n_x = 2 if training else 1
    x_bytes = 2 if use_bf16 else 4
    compiler_params = pltpu.CompilerParams(
        dimension_semantics=("parallel", "arbitrary"),
        vmem_limit_bytes=_vmem_budget(Bp, in_p, tk, tn, n_x, n_w, x_bytes, w_bytes),
    )
    cost = pl.CostEstimate(
        flops=(4 if training else 2) * B * in_f * out_f,
        transcendentals=0,
        bytes_accessed=int(n_w * in_p * out_p * w_bytes + n_x * Bp * in_p * x_bytes
                           + 2 * out_p * 4 + Bp * out_p * 4),
    )

    if training:
        eps_in_row = jnp.pad(params["eps_in"], (0, in_p - in_f)).reshape(1, in_p)
        xs = xp * eps_in_row                                     # pre-scale once (f32)
        x_in = xp.astype(w_dtype) if use_bf16 else xp
        xs_in = xs.astype(w_dtype) if use_bf16 else xs
        yp = pl.pallas_call(
            _noisy_train_kernel,
            out_shape=jax.ShapeDtypeStruct((Bp, out_p), x.dtype),
            grid_spec=pltpu.PrefetchScalarGridSpec(
                num_scalar_prefetch=0,
                grid=grid,
                in_specs=[x_res_spec, x_res_spec, w_spec, w_spec, row_spec, row_spec],
                out_specs=o_spec,
                scratch_shapes=[pltpu.VMEM((Bp, tn), jnp.float32),
                                pltpu.VMEM((Bp, tn), jnp.float32)],
            ),
            compiler_params=compiler_params,
            cost_estimate=cost,
        )(x_in, xs_in, wmu, wsig, eout_row.astype(jnp.float32), bias_row)
    else:
        x_in = xp.astype(w_dtype) if use_bf16 else xp
        yp = pl.pallas_call(
            _noisy_eval_kernel,
            out_shape=jax.ShapeDtypeStruct((Bp, out_p), x.dtype),
            grid_spec=pltpu.PrefetchScalarGridSpec(
                num_scalar_prefetch=0,
                grid=grid,
                in_specs=[x_res_spec, w_spec, row_spec],
                out_specs=o_spec,
                scratch_shapes=[pltpu.VMEM((Bp, tn), jnp.float32)],
            ),
            compiler_params=compiler_params,
            cost_estimate=cost,
        )(x_in, wmu, bias_row)

    return yp[:B, :out_f].reshape(*lead_shape, out_f)


# ---------------------------------------------------------------------------
# Parameter init (mirrors NoisyLinear.reset_parameters + reset_noise)
# ---------------------------------------------------------------------------
def _scale_noise(key, size):
    # f(x) = sign(x) * sqrt(|x|), x ~ N(0, 1)   (factorised Gaussian noise)
    v = jax.random.normal(key, (size,), dtype=jnp.float32)
    return jnp.sign(v) * jnp.sqrt(jnp.abs(v))


def init_noisy_linear(key, in_features, out_features, sigma_init=0.017,
                      weights_dtype=jnp.float32):
    """Weights are stored transposed ([in, out]), padded ONCE to tile-aligned
    shapes, optionally in bf16 (halves HBM weight traffic). Noise stays
    factorised (weight_epsilon = outer(eps_out, eps_in) is never materialised;
    bias_epsilon == eps_out as in the PyTorch module)."""
    k_wmu, k_bmu, k_ein, k_eout = jax.random.split(key, 4)
    mu_range = 1.0 / float(in_features) ** 0.5

    weight_mu = jax.random.uniform(
        k_wmu, (in_features, out_features), jnp.float32,
        minval=-mu_range, maxval=mu_range)
    weight_sigma = jnp.full((in_features, out_features), sigma_init, jnp.float32)
    bias_mu = jax.random.uniform(
        k_bmu, (out_features,), jnp.float32, minval=-mu_range, maxval=mu_range)
    bias_sigma = jnp.full((out_features,), sigma_init, jnp.float32)

    eps_in = _scale_noise(k_ein, in_features)
    eps_out = _scale_noise(k_eout, out_features)

    _, _, in_p, out_p = _pick_tiles(in_features, out_features)
    pad_w = lambda w: jnp.pad(
        w, ((0, in_p - in_features), (0, out_p - out_features))).astype(weights_dtype)

    return dict(
        in_features=in_features, out_features=out_features,
        weight_mu=pad_w(weight_mu), weight_sigma=pad_w(weight_sigma),
        eps_in=eps_in, eps_out=eps_out,
        bias_mu=bias_mu, bias_sigma=bias_sigma,
    )


def _reference(x, p, training=True):
    # PyTorch: W[out,in] = mu + sigma*outer(eps_out, eps_in); y = x @ W.T + b.
    # Weights here are already stored transposed/padded; slice + upcast.
    in_f, out_f = p["in_features"], p["out_features"]
    wmu = p["weight_mu"][:in_f, :out_f].astype(jnp.float32)
    wsig = p["weight_sigma"][:in_f, :out_f].astype(jnp.float32)
    if training:
        w_t = wmu + wsig * jnp.outer(p["eps_in"], p["eps_out"])
        b = p["bias_mu"] + p["bias_sigma"] * p["eps_out"]   # bias_epsilon == eps_out
    else:
        w_t = wmu
        b = p["bias_mu"]
    return x @ w_t + b


if __name__ == "__main__":
    key = jax.random.PRNGKey(0)
    k_param, k_x = jax.random.split(key)

    B, IN_F, OUT_F = 8, 32, 16
    params = init_noisy_linear(k_param, IN_F, OUT_F)
    x = jax.random.normal(k_x, (B, IN_F), dtype=jnp.float32)

    # Exact f32 paths (training + eval).
    y_train = jax.block_until_ready(noisy_linear_forward(x, params, training=True))
    y_eval = jax.block_until_ready(noisy_linear_forward(x, params, training=False))
    ref_train = _reference(x, params, training=True)
    ref_eval = _reference(x, params, training=False)
    assert jnp.allclose(y_train, ref_train, atol=1e-4, rtol=1e-4)
    assert jnp.allclose(y_eval, ref_eval, atol=1e-4, rtol=1e-4)

    # bf16-in-HBM weights: halves the dominant HBM weight stream and hits the
    # native bf16 MXU rate; combine/eps_out/bias/accumulation stay f32.
    # TODO(synk): bf16 storage trades ~0.4% relative weight error for 2x HBM
    # traffic — document if this layer feeds DQN value targets.
    params_bf16 = init_noisy_linear(k_param, IN_F, OUT_F, weights_dtype=jnp.bfloat16)
    y_bf16 = jax.block_until_ready(
        noisy_linear_forward(x, params_bf16, training=True))
    ref_bf16 = _reference(x, params_bf16, training=True)
    assert jnp.allclose(y_bf16, ref_bf16, atol=5e-2, rtol=5e-2)

    print("KERNEL_OK")
</pallas_src>

<mosaic_0001>
module attributes {stable_mosaic.version = 11 : i64} {
  func.func @_noisy_train_kernel(%arg0: i32, %arg1: i32, %arg2: memref<8x128xf32, #tpu.memory_space<vmem>>, %arg3: memref<8x128xf32, #tpu.memory_space<vmem>>, %arg4: memref<128x128xf32, #tpu.memory_space<vmem>>, %arg5: memref<128x128xf32, #tpu.memory_space<vmem>>, %arg6: memref<1x128xf32, #tpu.memory_space<vmem>>, %arg7: memref<1x128xf32, #tpu.memory_space<vmem>>, %arg8: memref<8x128xf32, #tpu.memory_space<vmem>>, %arg9: memref<8x128xf32, #tpu.memory_space<vmem>>, %arg10: memref<8x128xf32, #tpu.memory_space<vmem>>) attributes {dimension_semantics = [#tpu.dimension_semantics<parallel>, #tpu.dimension_semantics<arbitrary>], iteration_bounds = array<i64: 1, 1>, scalar_prefetch = 0 : i64, scratch_operands = 2 : i64, tpu.core_type = #tpu.core_type<tc>, window_params = [{pipeline_mode = #tpu.pipeline_mode<synchronous>, transform_indices = @transform_0, window_bounds = array<i64: 8, 128>}, {pipeline_mode = #tpu.pipeline_mode<synchronous>, transform_indices = @transform_1, window_bounds = array<i64: 8, 128>}, {transform_indices = @transform_2, window_bounds = array<i64: 128, 128>}, {transform_indices = @transform_3, window_bounds = array<i64: 128, 128>}, {transform_indices = @transform_4, window_bounds = array<i64: 1, 128>}, {transform_indices = @transform_5, window_bounds = array<i64: 1, 128>}, {transform_indices = @transform_6, window_bounds = array<i64: 8, 128>}]} {
    %c0_i32 = arith.constant 0 : i32
    %0 = arith.cmpi eq, %arg1, %c0_i32 : i32
    %1 = arith.extui %0 : i1 to i32
    %c0_i32_0 = arith.constant 0 : i32
    %2 = arith.cmpi ne, %1, %c0_i32_0 : i32
    scf.if %2 {
      %cst_17 = arith.constant 0.000000e+00 : f32
      %22 = vector.broadcast %cst_17 : f32 to vector<8x128xf32>
      %c0_18 = arith.constant 0 : index
      %c0_19 = arith.constant 0 : index
      %23 = vector.load %arg9[%c0_18, %c0_19] : memref<8x128xf32, #tpu.memory_space<vmem>>, vector<8x128xf32>
      tpu.vector_store %arg9[%c0_18, %c0_19], %22 {strides = array<i32>} : memref<8x128xf32, #tpu.memory_space<vmem>>, vector<8x128xf32>,
      %cst_20 = arith.constant 0.000000e+00 : f32
      %24 = vector.broadcast %cst_20 : f32 to vector<8x128xf32>
      %c0_21 = arith.constant 0 : index
      %c0_22 = arith.constant 0 : index
      %25 = vector.load %arg10[%c0_21, %c0_22] : memref<8x128xf32, #tpu.memory_space<vmem>>, vector<8x128xf32>
      tpu.vector_store %arg10[%c0_21, %c0_22], %24 {strides = array<i32>} : memref<8x128xf32, #tpu.memory_space<vmem>>, vector<8x128xf32>,
    } else {
    }
    %c128_i32 = arith.constant 128 : i32
    %3 = arith.muli %arg1, %c128_i32 : i32
    %4 = tpu.assume_multiple %3, 128 : i32
    %c0 = arith.constant 0 : index
    %c0_1 = arith.constant 0 : index
    %5 = vector.load %arg9[%c0, %c0_1] : memref<8x128xf32, #tpu.memory_space<vmem>>, vector<8x128xf32>
    %c0_2 = arith.constant 0 : index
    %6 = arith.index_cast %4 : i32 to index
    %7 = vector.load %arg2[%c0_2, %6] : memref<8x128xf32, #tpu.memory_space<vmem>>, vector<8x128xf32>
    %c0_3 = arith.constant 0 : index
    %c0_4 = arith.constant 0 : index
    %8 = vector.load %arg4[%c0_3, %c0_4] : memref<128x128xf32, #tpu.memory_space<vmem>>, vector<128x128xf32>
    %cst = arith.constant dense<0.000000e+00> : vector<8x128xf32>
    %9 = tpu.matmul %7, %8, %cst {dimension_numbers = #tpu.dot_dimension_numbers<[1], [0], [0], [1], [0, 0, 1, 1], [], []>} : vector<8x128xf32>, vector<128x128xf32>, vector<8x128xf32> -> vector<8x128xf32>
    %10 = arith.addf %5, %9 : vector<8x128xf32>
    %c0_5 = arith.constant 0 : index
    %c0_6 = arith.constant 0 : index
    %11 = vector.load %arg9[%c0_5, %c0_6] : memref<8x128xf32, #tpu.memory_space<vmem>>, vector<8x128xf32>
    tpu.vector_store %arg9[%c0_5, %c0_6], %10 {strides = array<i32>} : memref<8x128xf32, #tpu.memory_space<vmem>>, vector<8x128xf32>,
    %c0_7 = arith.constant 0 : index
    %c0_8 = arith.constant 0 : index
    %12 = vector.load %arg10[%c0_7, %c0_8] : memref<8x128xf32, #tpu.memory_space<vmem>>, vector<8x128xf32>
    %c0_9 = arith.constant 0 : index
    %13 = arith.index_cast %4 : i32 to index
    %14 = vector.load %arg3[%c0_9, %13] : memref<8x128xf32, #tpu.memory_space<vmem>>, vector<8x128xf32>
    %c0_10 = arith.constant 0 : index
    %c0_11 = arith.constant 0 : index
    %15 = vector.load %arg5[%c0_10, %c0_11] : memref<128x128xf32, #tpu.memory_space<vmem>>, vector<128x128xf32>
    %cst_12 = arith.constant dense<0.000000e+00> : vector<8x128xf32>
    %16 = tpu.matmul %14, %15, %cst_12 {dimension_numbers = #tpu.dot_dimension_numbers<[1], [0], [0], [1], [0, 0, 1, 1], [], []>} : vector<8x128xf32>, vector<128x128xf32>, vector<8x128xf32> -> vector<8x128xf32>
    %17 = arith.addf %12, %16 : vector<8x128xf32>
    %c0_13 = arith.constant 0 : index
    %c0_14 = arith.constant 0 : index
    %18 = vector.load %arg10[%c0_13, %c0_14] : memref<8x128xf32, #tpu.memory_space<vmem>>, vector<8x128xf32>
    tpu.vector_store %arg10[%c0_13, %c0_14], %17 {strides = array<i32>} : memref<8x128xf32, #tpu.memory_space<vmem>>, vector<8x128xf32>,
    %c0_i32_15 = arith.constant 0 : i32
    %19 = arith.cmpi eq, %arg1, %c0_i32_15 : i32
    %20 = arith.extui %19 : i1 to i32
    %c0_i32_16 = arith.constant 0 : i32
    %21 = arith.cmpi ne, %20, %c0_i32_16 : i32
    scf.if %21 {
      %c0_17 = arith.constant 0 : index
      %c0_18 = arith.constant 0 : index
      %22 = vector.load %arg9[%c0_17, %c0_18] : memref<8x128xf32, #tpu.memory_space<vmem>>, vector<8x128xf32>
      %c0_19 = arith.constant 0 : index
      %c0_20 = arith.constant 0 : index
      %23 = vector.load %arg10[%c0_19, %c0_20] : memref<8x128xf32, #tpu.memory_space<vmem>>, vector<8x128xf32>
      %c0_21 = arith.constant 0 : index
      %c0_22 = arith.constant 0 : index
      %24 = vector.load %arg6[%c0_21, %c0_22] : memref<1x128xf32, #tpu.memory_space<vmem>>, vector<1x128xf32>
      %25 = vector.broadcast %24 : vector<1x128xf32> to vector<8x128xf32>
      %26 = arith.mulf %23, %25 : vector<8x128xf32>
      %27 = arith.addf %22, %26 : vector<8x128xf32>
      %c0_23 = arith.constant 0 : index
      %c0_24 = arith.constant 0 : index
      %28 = vector.load %arg7[%c0_23, %c0_24] : memref<1x128xf32, #tpu.memory_space<vmem>>, vector<1x128xf32>
      %29 = vector.broadcast %28 : vector<1x128xf32> to vector<8x128xf32>
      %30 = arith.addf %27, %29 : vector<8x128xf32>
      %c0_25 = arith.constant 0 : index
      %c0_26 = arith.constant 0 : index
      %31 = vector.load %arg8[%c0_25, %c0_26] : memref<8x128xf32, #tpu.memory_space<vmem>>, vector<8x128xf32>
      tpu.vector_store %arg8[%c0_25, %c0_26], %30 {strides = array<i32>} : memref<8x128xf32, #tpu.memory_space<vmem>>, vector<8x128xf32>,
    } else {
    }
    return
  }
  func.func @transform_0(%arg0: i32, %arg1: i32) -> (i32, i32) {
    %c0_i32 = arith.constant 0 : i32
    %c0_i32_0 = arith.constant 0 : i32
    %c0_i32_1 = arith.constant 0 : i32
    return %c0_i32, %c0_i32_0 : i32, i32
  }
  func.func @transform_1(%arg0: i32, %arg1: i32) -> (i32, i32) {
    %c0_i32 = arith.constant 0 : i32
    %c0_i32_0 = arith.constant 0 : i32
    %c0_i32_1 = arith.constant 0 : i32
    return %c0_i32, %c0_i32_0 : i32, i32
  }
  func.func @transform_2(%arg0: i32, %arg1: i32) -> (i32, i32) {
    %c0_i32 = arith.constant 0 : i32
    return %arg1, %arg0 : i32, i32
  }
  func.func @transform_3(%arg0: i32, %arg1: i32) -> (i32, i32) {
    %c0_i32 = arith.constant 0 : i32
    return %arg1, %arg0 : i32, i32
  }
  func.func @transform_4(%arg0: i32, %arg1: i32) -> (i32, i32) {
    %c0_i32 = arith.constant 0 : i32
    %c0_i32_0 = arith.constant 0 : i32
    return %c0_i32, %arg0 : i32, i32
  }
  func.func @transform_5(%arg0: i32, %arg1: i32) -> (i32, i32) {
    %c0_i32 = arith.constant 0 : i32
    %c0_i32_0 = arith.constant 0 : i32
    return %c0_i32, %arg0 : i32, i32
  }
  func.func @transform_6(%arg0: i32, %arg1: i32) -> (i32, i32) {
    %c0_i32 = arith.constant 0 : i32
    %c0_i32_0 = arith.constant 0 : i32
    return %c0_i32, %arg0 : i32, i32
  }
}

</mosaic_0001>

<llo_original>
// kernel: tpu_custom_call.1
$region0: #{tpu_custom_call.1}
  #allocation0 [shape = 'u32[]', space=smem, size = 0x4, offset = 0x4, fixed_abs, tag = 'smem constant byte address 0x4 - core index']
  #allocation1 [shape = 'u32[144,128]{1,0:T(1,128)}', space=vmem, size = 0x12000, scoped, tag = 'internal scratch']
  #allocation2 [shape = 'f32[8,128]{1,0:T(8,128)}', space=vmem, size = 0x1000, scoped, tag = 'scratch operand']
  #allocation3 [shape = 'f32[8,128]{1,0:T(8,128)}', space=vmem, size = 0x1000, scoped, tag = 'scratch operand']
  %s0 = inlined_call_operand.hbm [shape: f32[8,128], index: 0, kind: input, shape index: {}]
  %s1 = inlined_call_operand.hbm [shape: f32[8,128], index: 1, kind: input, shape index: {}]
  %s2 = inlined_call_operand.hbm [shape: f32[128,128], index: 2, kind: input, shape index: {}]
  %s3 = inlined_call_operand.hbm [shape: f32[128,128], index: 3, kind: input, shape index: {}]
  %s4 = inlined_call_operand.vmem [shape: f32[1,128], index: 4, kind: input, shape index: {}]
  %s5 = inlined_call_operand.vmem [shape: f32[1,128], index: 5, kind: input, shape index: {}]
  %s6 = inlined_call_operand.hbm [shape: f32[8,128], index: 6, kind: output, shape index: {}]
  %s7 = sld [smem:[#allocation0]]
  $region58: #{tpu_custom_call.1} parent=0
    _
  %s9 = ssub.s32 1, %s7
  %s10 = scalar_select 0, %s9, %s7
  $region1: #{tpu_custom_call.1} parent=0
    #allocation4 [shape = 'u8[4096]{0}', space=vmem, size = 0x1000, scoped, tag = 'input window, operand 0, single buffered']
    #allocation5 [shape = 's32[1]{0}', space=sflag, size = 0x4, scoped, tag = 'scoped memory for tpu_custom_call.1']
    #allocation6 [shape = 's32[1]{0}', space=sflag, size = 0x4, scoped, tag = 'scoped memory for tpu_custom_call.1']
    #allocation7 [shape = 'u8[4096]{0}', space=vmem, size = 0x1000, scoped, tag = 'input window, operand 1, single buffered']
    #allocation8 [shape = 's32[1]{0}', space=sflag, size = 0x4, scoped, tag = 'scoped memory for tpu_custom_call.1']
    #allocation9 [shape = 'u8[65536]{0}', space=vmem, size = 0x10000, scoped, tag = 'input window, operand 2, single buffered']
    #allocation10 [shape = 'u8[65536]{0}', space=vmem, size = 0x10000, scoped, tag = 'input window, operand 3, single buffered']
    #allocation11 [shape = 's32[1]{0}', space=sflag, size = 0x4, scoped, tag = 'scoped memory for tpu_custom_call.1']
    #allocation12 [shape = 'u8[4096]{0}', space=vmem, size = 0x1000, scoped, tag = 'output window, operand 0, single buffered']
    %11 = vsyncpa [#allocation5], 0
    %12 = vsyncpa [#allocation8], 0
    %13 = vsyncpa [#allocation11], 0
    %14 = vsyncpa [#allocation6], 0
    // Predicated region
    $region2: #{tpu_custom_call.1} parent=1 // pred_check
      _
    $region3: #{tpu_custom_call.1} parent=1 // pred_check_branch
      %16 = sbr.rel (0) target = $region5
    $region4: #{tpu_custom_call.1} parent=1 // pred_region
      %s18 = ssub.s32 128, 128
      %19 = vsyncadd [#allocation5], %s18
      %s21 = sshll.u32 [#allocation4], 4
      %s22 = int_to_ptr.vmem [resolvable:$true] %s21
      %24 = dma.hbm_to_vmem [thread:$0]  %s0, 128, %s22, [#allocation5]
    $region5: #{tpu_custom_call.1} parent=1 // pred_fallthru
      _
    // Predicated region
    $region6: #{tpu_custom_call.1} parent=1 // pred_check
      _
    $region7: #{tpu_custom_call.1} parent=1 // pred_check_branch
      %26 = sbr.rel (0) target = $region9
    $region8: #{tpu_custom_call.1} parent=1 // pred_region
      %s28 = ssub.s32 128, 128
      %29 = vsyncadd [#allocation8], %s28
      %s31 = sshll.u32 [#allocation7], 4
      %s32 = int_to_ptr.vmem [resolvable:$true] %s31
      %34 = dma.hbm_to_vmem [thread:$0]  %s1, 128, %s32, [#allocation8]
    $region9: #{tpu_custom_call.1} parent=1 // pred_fallthru
      _
    // Predicated region
    $region10: #{tpu_custom_call.1} parent=1 // pred_check
      _
    $region11: #{tpu_custom_call.1} parent=1 // pred_check_branch
      %36 = sbr.rel (0) target = $region13
    $region12: #{tpu_custom_call.1} parent=1 // pred_region
      %s38 = ssub.s32 2048, 2048
      %39 = vsyncadd [#allocation8], %s38
      %s40 = sshll.u32 [#allocation9], 4
      %s41 = int_to_ptr.vmem [resolvable:$true] %s40
      %46 = dma.hbm_to_vmem [thread:$0]  %s2, 2048, %s41, [#allocation8], 128, 128, 8
    $region13: #{tpu_custom_call.1} parent=1 // pred_fallthru
      _
    // Predicated region
    $region14: #{tpu_custom_call.1} parent=1 // pred_check
      _
    $region15: #{tpu_custom_call.1} parent=1 // pred_check_branch
      %48 = sbr.rel (0) target = $region17
    $region16: #{tpu_custom_call.1} parent=1 // pred_region
      %s50 = ssub.s32 2048, 2048
      %51 = vsyncadd [#allocation11], %s50
      %s52 = sshll.u32 [#allocation10], 4
      %s53 = int_to_ptr.vmem [resolvable:$true] %s52
      %58 = dma.hbm_to_vmem [thread:$0]  %s3, 2048, %s53, [#allocation11], 128, 128, 8
    $region17: #{tpu_custom_call.1} parent=1 // pred_fallthru
      _
    // Predicated region
    $region18: #{tpu_custom_call.1} parent=1 // pred_check
      _
    $region19: #{tpu_custom_call.1} parent=1 // pred_check_branch
      %60 = sbr.rel (0) target = $region21
    $region20: #{tpu_custom_call.1} parent=1 // pred_region
      _
    $region21: #{tpu_custom_call.1} parent=1 // pred_fallthru
      _
    // Predicated region
    $region22: #{tpu_custom_call.1} parent=1 // pred_check
      _
    $region23: #{tpu_custom_call.1} parent=1 // pred_check_branch
      %62 = sbr.rel (0) target = $region25
    $region24: #{tpu_custom_call.1} parent=1 // pred_region
      _
    $region25: #{tpu_custom_call.1} parent=1 // pred_fallthru
      _
    // Predicated region
    $region26: #{tpu_custom_call.1} parent=1 // pred_check
      _
    $region27: #{tpu_custom_call.1} parent=1 // pred_check_branch
      %64 = sbr.rel (0) target = $region29
    $region28: #{tpu_custom_call.1} parent=1 // pred_region
      %65 = dma.done [#allocation5], 128
    $region29: #{tpu_custom_call.1} parent=1 // pred_fallthru
      _
    // Predicated region
    $region30: #{tpu_custom_call.1} parent=1 // pred_check
      _
    $region31: #{tpu_custom_call.1} parent=1 // pred_check_branch
      %67 = sbr.rel (0) target = $region33
    $region32: #{tpu_custom_call.1} parent=1 // pred_region
      %68 = dma.done [#allocation8], 128
    $region33: #{tpu_custom_call.1} parent=1 // pred_fallthru
      _
    // Predicated region
    $region34: #{tpu_custom_call.1} parent=1 // pred_check
      _
    $region35: #{tpu_custom_call.1} parent=1 // pred_check_branch
      %70 = sbr.rel (0) target = $region37
    $region36: #{tpu_custom_call.1} parent=1 // pred_region
      %71 = dma.done [#allocation8], 2048
    $region37: #{tpu_custom_call.1} parent=1 // pred_fallthru
      _
    // Predicated region
    $region38: #{tpu_custom_call.1} parent=1 // pred_check
      _
    $region39: #{tpu_custom_call.1} parent=1 // pred_check_branch
      %73 = sbr.rel (0) target = $region41
    $region40: #{tpu_custom_call.1} parent=1 // pred_region
      %74 = dma.done [#allocation11], 2048
    $region41: #{tpu_custom_call.1} parent=1 // pred_fallthru
      _
    %p75 = scmp.eq.s32.totalorder 0, 0
    // Predicated region
    $region42: #{tpu_custom_call.1} parent=1 // pred_check
      %p76 = pneg %p75
    $region43: #{tpu_custom_call.1} parent=1 // pred_check_branch
      %78 = sbr.rel (%p76) target = $region45
    $region44: #{tpu_custom_call.1} parent=1 // pred_region
      %79 = vst [vmem:[#allocation2] sm:$0xff] 0.0
      %80 = vst [vmem:[#allocation3] sm:$0xff] 0.0
    $region45: #{tpu_custom_call.1} parent=1 // pred_fallthru
      _
    %s81 = smul.u32 0, 128
    %v82 = vld [vmem:[#allocation2] sm:$0xff]
    %s83 = sshra.s32 %s81, 7
    %s84 = sand.u32 %s81, 127
    %s85 = scalar_lea.vmem [#allocation4], %s83
    %v86 = vld [vmem:[%s85] sm:$0xff]
    %v87 = vld [vmem:[#allocation9] sm:$0xff]
    %v88 = vld [vmem:[#allocation9 + $0x8] sm:$0xff]
    %v89 = vld [vmem:[#allocation9 + $0x10] sm:$0xff]
    %v90 = vld [vmem:[#allocation9 + $0x18] sm:$0xff]
    %v91 = vld [vmem:[#allocation9 + $0x20] sm:$0xff]
    %v92 = vld [vmem:[#allocation9 + $0x28] sm:$0xff]
    %v93 = vld [vmem:[#allocation9 + $0x30] sm:$0xff]
    %v94 = vld [vmem:[#allocation9 + $0x38] sm:$0xff]
    %v95 = vld [vmem:[#allocation9 + $0x40] sm:$0xff]
    %v96 = vld [vmem:[#allocation9 + $0x48] sm:$0xff]
    %v97 = vld [vmem:[#allocation9 + $0x50] sm:$0xff]
    %v98 = vld [vmem:[#allocation9 + $0x58] sm:$0xff]
    %v99 = vld [vmem:[#allocation9 + $0x60] sm:$0xff]
    %v100 = vld [vmem:[#allocation9 + $0x68] sm:$0xff]
    %v101 = vld [vmem:[#allocation9 + $0x70] sm:$0xff]
    %v102 = vld [vmem:[#allocation9 + $0x78] sm:$0xff]
    %103 = vmatprep.subr.mxu0 0.0
    %104 = vmatpush1.msra.mxu0 %v87
    %105 = vmatprep.subr.mxu0 0.0
    %106 = vmatpush1.msra.mxu0 %v88
    %107 = vmatprep.subr.mxu0 0.0
    %108 = vmatpush1.msra.mxu0 %v89
    %109 = vmatprep.subr.mxu0 0.0
    %110 = vmatpush1.msra.mxu0 %v90
    %111 = vmatprep.subr.mxu0 0.0
    %112 = vmatpush1.msra.mxu0 %v91
    %113 = vmatprep.subr.mxu0 0.0
    %114 = vmatpush1.msra.mxu0 %v92
    %115 = vmatprep.subr.mxu0 0.0
    %116 = vmatpush1.msra.mxu0 %v93
    %117 = vmatprep.subr.mxu0 0.0
    %118 = vmatpush1.msra.mxu0 %v94
    %119 = vmatprep.subr.mxu0 0.0
    %120 = vmatpush1.msra.mxu0 %v95
    %121 = vmatprep.subr.mxu0 0.0
    %122 = vmatpush1.msra.mxu0 %v96
    %123 = vmatprep.subr.mxu0 0.0
    %124 = vmatpush1.msra.mxu0 %v97
    %125 = vmatprep.subr.mxu0 0.0
    %126 = vmatpush1.msra.mxu0 %v98
    %127 = vmatprep.subr.mxu0 0.0
    %128 = vmatpush1.msra.mxu0 %v99
    %129 = vmatprep.subr.mxu0 0.0
    %130 = vmatpush1.msra.mxu0 %v100
    %131 = vmatprep.subr.mxu0 0.0
    %132 = vmatpush1.msra.mxu0 %v101
    %133 = vmatprep.subr.mxu0 0.0
    %134 = vmatpush1.msra.mxu0 %v102
    %135 = vmatprep.subr.mxu0 0.0
    %136 = vmatpush1.msra.mxu0 0.0
    %137 = vmatprep.subr.mxu0 0.0
    %138 = vmatpush1.msra.mxu0 0.0
    %139 = vmatprep.subr.mxu0 0.0
    %140 = vmatpush1.msra.mxu0 0.0
    %141 = vmatprep.subr.mxu0 0.0
    %142 = vmatpush1.msra.mxu0 0.0
    %143 = vmatprep.subr.mxu0 0.0
    %144 = vmatpush1.msra.mxu0 0.0
    %145 = vmatprep.subr.mxu0 0.0
    %146 = vmatpush1.msra.mxu0 0.0
    %147 = vmatprep.subr.mxu0 0.0
    %148 = vmatpush1.msra.mxu0 0.0
    %149 = vmatprep.subr.mxu0 0.0
    %150 = vmatpush1.msra.mxu0 0.0
    %151 = vmatprep.subr.mxu0 0.0
    %152 = vmatpush1.msra.mxu0 0.0
    %153 = vmatprep.subr.mxu0 0.0
    %154 = vmatpush1.msra.mxu0 0.0
    %155 = vmatprep.subr.mxu0 0.0
    %156 = vmatpush1.msra.mxu0 0.0
    %157 = vmatprep.subr.mxu0 0.0
    %158 = vmatpush1.msra.mxu0 0.0
    %159 = vmatprep.subr.mxu0 0.0
    %160 = vmatpush1.msra.mxu0 0.0
    %161 = vmatprep.subr.mxu0 0.0
    %162 = vmatpush1.msra.mxu0 0.0
    %163 = vmatprep.subr.mxu0 0.0
    %164 = vmatpush1.msra.mxu0 0.0
    %165 = vmatprep.subr.mxu0 0.0
    %166 = vmatpush1.msra.mxu0 0.0
    %167 = vmatprep.mubr.f32.mxu0 0.0
    %168 = vmatmul.mubr.f32.gmra.mrb[0].mxu0 %v86
    %v169 = vpop.f32.mrb[0].mxu0
    %v170 = vadd.f32 0.0, %v169
    %v171 = vpop.f32.mrb[0].mxu0
    %172 = vdwg.mxu0
    %v173 = vadd.f32 %v82, %v170
    %174 = vst [vmem:[#allocation2] sm:$0xff] %v173
    %v175 = vld [vmem:[#allocation3] sm:$0xff]
    %s176 = scalar_lea.vmem [#allocation7], %s83
    %v177 = vld [vmem:[%s176] sm:$0xff]
    %v178 = vld [vmem:[#allocation10] sm:$0xff]
    %v179 = vld [vmem:[#allocation10 + $0x8] sm:$0xff]
    %v180 = vld [vmem:[#allocation10 + $0x10] sm:$0xff]
    %v181 = vld [vmem:[#allocation10 + $0x18] sm:$0xff]
    %v182 = vld [vmem:[#allocation10 + $0x20] sm:$0xff]
    %v183 = vld [vmem:[#allocation10 + $0x28] sm:$0xff]
    %v184 = vld [vmem:[#allocation10 + $0x30] sm:$0xff]
    %v185 = vld [vmem:[#allocation10 + $0x38] sm:$0xff]
    %v186 = vld [vmem:[#allocation10 + $0x40] sm:$0xff]
    %v187 = vld [vmem:[#allocation10 + $0x48] sm:$0xff]
    %v188 = vld [vmem:[#allocation10 + $0x50] sm:$0xff]
    %v189 = vld [vmem:[#allocation10 + $0x58] sm:$0xff]
    %v190 = vld [vmem:[#allocation10 + $0x60] sm:$0xff]
    %v191 = vld [vmem:[#allocation10 + $0x68] sm:$0xff]
    %v192 = vld [vmem:[#allocation10 + $0x70] sm:$0xff]
    %v193 = vld [vmem:[#allocation10 + $0x78] sm:$0xff]
    %194 = vmatprep.subr.mxu0 0.0
    %195 = vmatpush1.msra.mxu0 %v178
    %196 = vmatprep.subr.mxu0 0.0
    %197 = vmatpush1.msra.mxu0 %v179
    %198 = vmatprep.subr.mxu0 0.0
    %199 = vmatpush1.msra.mxu0 %v180
    %200 = vmatprep.subr.mxu0 0.0
    %201 = vmatpush1.msra.mxu0 %v181
    %202 = vmatprep.subr.mxu0 0.0
    %203 = vmatpush1.msra.mxu0 %v182
    %204 = vmatprep.subr.mxu0 0.0
    %205 = vmatpush1.msra.mxu0 %v183
    %206 = vmatprep.subr.mxu0 0.0
    %207 = vmatpush1.msra.mxu0 %v184
    %208 = vmatprep.subr.mxu0 0.0
    %209 = vmatpush1.msra.mxu0 %v185
    %210 = vmatprep.subr.mxu0 0.0
    %211 = vmatpush1.msra.mxu0 %v186
    %212 = vmatprep.subr.mxu0 0.0
    %213 = vmatpush1.msra.mxu0 %v187
    %214 = vmatprep.subr.mxu0 0.0
    %215 = vmatpush1.msra.mxu0 %v188
    %216 = vmatprep.subr.mxu0 0.0
    %217 = vmatpush1.msra.mxu0 %v189
    %218 = vmatprep.subr.mxu0 0.0
    %219 = vmatpush1.msra.mxu0 %v190
    %220 = vmatprep.subr.mxu0 0.0
    %221 = vmatpush1.msra.mxu0 %v191
    %222 = vmatprep.subr.mxu0 0.0
    %223 = vmatpush1.msra.mxu0 %v192
    %224 = vmatprep.subr.mxu0 0.0
    %225 = vmatpush1.msra.mxu0 %v193
    %226 = vmatprep.subr.mxu0 0.0
    %227 = vmatpush1.msra.mxu0 0.0
    %228 = vmatprep.subr.mxu0 0.0
    %229 = vmatpush1.msra.mxu0 0.0
    %230 = vmatprep.subr.mxu0 0.0
    %231 = vmatpush1.msra.mxu0 0.0
    %232 = vmatprep.subr.mxu0 0.0
    %233 = vmatpush1.msra.mxu0 0.0
    %234 = vmatprep.subr.mxu0 0.0
    %235 = vmatpush1.msra.mxu0 0.0
    %236 = vmatprep.subr.mxu0 0.0
    %237 = vmatpush1.msra.mxu0 0.0
    %238 = vmatprep.subr.mxu0 0.0
    %239 = vmatpush1.msra.mxu0 0.0
    %240 = vmatprep.subr.mxu0 0.0
    %241 = vmatpush1.msra.mxu0 0.0
    %242 = vmatprep.subr.mxu0 0.0
    %243 = vmatpush1.msra.mxu0 0.0
    %244 = vmatprep.subr.mxu0 0.0
    %245 = vmatpush1.msra.mxu0 0.0
    %246 = vmatprep.subr.mxu0 0.0
    %247 = vmatpush1.msra.mxu0 0.0
    %248 = vmatprep.subr.mxu0 0.0
    %249 = vmatpush1.msra.mxu0 0.0
    %250 = vmatprep.subr.mxu0 0.0
    %251 = vmatpush1.msra.mxu0 0.0
    %252 = vmatprep.subr.mxu0 0.0
    %253 = vmatpush1.msra.mxu0 0.0
    %254 = vmatprep.subr.mxu0 0.0
    %255 = vmatpush1.msra.mxu0 0.0
    %256 = vmatprep.subr.mxu0 0.0
    %257 = vmatpush1.msra.mxu0 0.0
    %258 = vmatprep.mubr.f32.mxu0 0.0
    %259 = vmatmul.mubr.f32.gmra.mrb[0].mxu0 %v177
    %v260 = vpop.f32.mrb[0].mxu0
    %v261 = vadd.f32 0.0, %v260
    %v262 = vpop.f32.mrb[0].mxu0
    %263 = vdwg.mxu0
    %v264 = vadd.f32 %v175, %v261
    %265 = vst [vmem:[#allocation3] sm:$0xff] %v264
    // Predicated region
    $region46: #{tpu_custom_call.1} parent=1 // pred_check
      %p266 = pneg %p75
    $region47: #{tpu_custom_call.1} parent=1 // pred_check_branch
      %268 = sbr.rel (%p266) target = $region49
    $region48: #{tpu_custom_call.1} parent=1 // pred_region
      %v269 = vld [vmem:[#allocation2] sm:$0xff]
      %v270 = vld [vmem:[#allocation3] sm:$0xff]
      %v271 = vld [vmem:[%s4] sm:$0x1]
      %v273 = vlaneseq
      %v274 = vshrl.u32 %v273, 7
      %v275 = vsub.s32 0, %v274
      %v276 = vrot.slane %v271, %v275
      %v278 = vmul.f32 %v270, %v276
      %v279 = vadd.f32 %v269, %v278
      %v280 = vld [vmem:[%s5] sm:$0x1]
      %v282 = vlaneseq
      %v283 = vshrl.u32 %v282, 7
      %v284 = vsub.s32 0, %v283
      %v285 = vrot.slane %v280, %v284
      %v287 = vadd.f32 %v279, %v285
      %288 = vst [vmem:[#allocation12] sm:$0xff] %v287
    $region49: #{tpu_custom_call.1} parent=1 // pred_fallthru
      _
    // Predicated region
    $region50: #{tpu_custom_call.1} parent=1 // pred_check
      _
    $region51: #{tpu_custom_call.1} parent=1 // pred_check_branch
      %290 = sbr.rel (0) target = $region53
    $region52: #{tpu_custom_call.1} parent=1 // pred_region
      %s292 = ssub.s32 128, 128
      %293 = vsyncadd [#allocation6], %s292
      %s295 = sshll.u32 [#allocation12], 4
      %s296 = int_to_ptr.vmem [resolvable:$true] %s295
      %298 = dma.vmem_to_hbm [thread:$0]  %s296, 128, %s6, [#allocation6]
    $region53: #{tpu_custom_call.1} parent=1 // pred_fallthru
      _
    // Predicated region
    $region54: #{tpu_custom_call.1} parent=1 // pred_check
      _
    $region55: #{tpu_custom_call.1} parent=1 // pred_check_branch
      %300 = sbr.rel (0) target = $region57
    $region56: #{tpu_custom_call.1} parent=1 // pred_region
      %301 = dma.done [#allocation6], 128
    $region57: #{tpu_custom_call.1} parent=1 // pred_fallthru
      _
    %302 = vsyncpa [#allocation5], 1
    %303 = vsyncpa [#allocation8], 1
    %304 = vsyncpa [#allocation11], 1
    %305 = vsyncpa [#allocation6], 1

</llo_original>
